<compile_context>
chip_gen: v6e
topology: v6e:2x2x1
jax: 0.10.0
libtpu: 0.0.40
codegen_flags: <defaults>
</compile_context>

<pallas_src>
import math

import numpy as np

import jax
import jax.numpy as jnp
from jax.experimental import pallas as pl
from jax.experimental.pallas import tpu as pltpu


# ---------------------------------------------------------------------------
# Exact PyTorch bilinear interpolation weights, built host-side with numpy.
# ---------------------------------------------------------------------------
def _interp_matrix(in_size: int, out_size: int, align_corners: bool) -> np.ndarray:
    out_idx = np.arange(out_size, dtype=np.float64)
    if align_corners:
        if out_size == 1:
            src = np.zeros((out_size,), np.float64)
        else:
            src = out_idx * (float(in_size - 1) / float(out_size - 1))
    else:
        scale = float(in_size) / float(out_size)
        src = (out_idx + 0.5) * scale - 0.5
        src = np.maximum(src, 0.0)  # PyTorch clamps negative source coords to 0
    i0 = np.clip(np.floor(src).astype(np.int64), 0, in_size - 1)
    i1 = np.minimum(i0 + 1, in_size - 1)
    l1 = src - i0
    l0 = 1.0 - l1
    w = np.zeros((out_size, in_size), np.float64)
    rows = np.arange(out_size)
    np.add.at(w, (rows, i0), l0)   # scatter-add handles the i0 == i1 border case
    np.add.at(w, (rows, i1), l1)
    return w.astype(np.float32)


# ---------------------------------------------------------------------------
# Kernel: one block of Cb channels per grid step, per-channel separable matmuls.
# ---------------------------------------------------------------------------
def _interp_kernel(x_ref, wh_ref, wwt_ref, o_ref):
    # x_ref  : (Cb, H, W)    block of channels (input dtype)
    # wh_ref : (Ho, H)       row (height) interpolation weights, f32
    # wwt_ref: (W, Wo)       column (width) weights, pre-transposed, f32
    # o_ref  : (Cb, Ho, Wo)
    cb = x_ref.shape[0]

    # Weights are loaded once per grid step and stay stationary across the
    # per-channel loop (no Cb-wide broadcast is ever materialized).
    wh = wh_ref[...]
    wwt = wwt_ref[...]

    def body(ci, carry):
        xc = x_ref[ci].astype(jnp.float32)                             # (H, W)
        u = jnp.dot(wh, xc, preferred_element_type=jnp.float32)        # (Ho, W)
        y = jnp.dot(u, wwt, preferred_element_type=jnp.float32)        # (Ho, Wo)
        o_ref[ci] = y.astype(o_ref.dtype)
        return carry

    jax.lax.fori_loop(0, cb, body, 0)


# ---------------------------------------------------------------------------
# VMEM sizing (generation-aware) and channel-block selection.
# ---------------------------------------------------------------------------
def _round_up(v: int, m: int) -> int:
    return ((v + m - 1) // m) * m


def _vmem_budgets():
    """Returns (tile_budget_bytes, vmem_limit_bytes) for the current chip.

    v5e/v6e have 128 MiB of VMEM (scoped default only 16/32 MiB) -> ~104 MiB
    limit, ~92 MiB tile budget.  v7x has only 64 MiB physical -> ~52 MiB limit
    with headroom left for Mosaic internal scratch.
    """
    try:
        cap = int(pltpu.get_tpu_info().vmem_capacity_bytes)
    except Exception:
        cap = 64 << 20                      # conservative (v7x-sized) fallback
    limit = max(32 << 20, min(104 << 20, cap - (12 << 20)))
    budget = max(24 << 20, limit - (12 << 20))
    return budget, limit


def _pick_channel_block(nc, h, w, ho, wo, itemsize, budget, cb_cap=None):
    """Channels per grid step.

    Picks the largest block that fits the VMEM tile budget (double-buffered,
    lane/sublane-padded in/out tiles), then trims it so the realized grid has
    an even number of balanced steps (v7x's two TensorCores share the grid).
    The leading (channel) dim has no (8,128) constraint, so no padding of N*C
    is required and the last block may be ragged (Pallas masks OOB writes).
    """
    h_p, ho_p = _round_up(h, 8), _round_up(ho, 8)
    w_p, wo_p = _round_up(w, 128), _round_up(wo, 128)
    # VMEM that does NOT scale with the channel block: the two weight matrices,
    # the per-channel f32 intermediates inside the loop, Mosaic scratch slop.
    fixed = (ho_p * _round_up(h, 128) + _round_up(w, 8) * wo_p) * 4
    fixed += (ho_p * w_p + ho_p * wo_p) * 4
    fixed += 2 << 20
    # Double-buffered (default Buffered(2)) input + output tiles per channel.
    per_ch = 2 * (h_p * w_p + ho_p * wo_p) * itemsize
    cb_max = max(1, int((budget - fixed) // per_ch))
    cb_max = min(cb_max, 1024)
    if cb_cap is not None:
        cb_max = min(cb_max, int(cb_cap))
    if cb_max >= nc:
        return nc                                   # single grid step
    steps = pl.cdiv(nc, cb_max)
    if steps % 2:
        steps += 1                                  # even step count for 2 TCs
    cb = pl.cdiv(nc, steps)
    while cb > 1 and pl.cdiv(nc, cb) % 2:           # keep realized grid even
        cb -= 1
    return max(1, cb)


# ---------------------------------------------------------------------------
# Wrapper
# ---------------------------------------------------------------------------
def interpolate_pallas(x, scale_factor=None, mode="bilinear", align_corners=True,
                       size=None, max_channels_per_block=None):
    """Equivalent of DPT's Interpolate(scale_factor, mode, align_corners)(x), NCHW."""
    assert mode == "bilinear", "only bilinear mode is implemented"
    # TODO(synk): nearest / bicubic modes of F.interpolate are not implemented here.
    n, c, h, w = x.shape
    if size is not None:
        ho, wo = int(size[0]), int(size[1])
    else:
        ho = int(math.floor(h * scale_factor))
        wo = int(math.floor(w * scale_factor))

    # Always f32 weights / f32 accumulation (PyTorch computes bilinear weights
    # in fp32 even for bf16 tensors; the kernel is HBM-bound so this is free).
    wh = jnp.asarray(_interp_matrix(h, ho, align_corners))         # (Ho, H)  f32
    wwt = jnp.asarray(_interp_matrix(w, wo, align_corners).T)      # (W, Wo)  f32

    nc = n * c
    budget, vmem_limit = _vmem_budgets()
    cb = _pick_channel_block(nc, h, w, ho, wo, jnp.dtype(x.dtype).itemsize,
                             budget, cb_cap=max_channels_per_block)
    grid = pl.cdiv(nc, cb)

    xf = x.reshape(nc, h, w)   # metadata-only reshape, no HBM copy

    out_flat = pl.pallas_call(
        _interp_kernel,
        out_shape=jax.ShapeDtypeStruct((nc, ho, wo), x.dtype),
        grid=(grid,),
        in_specs=[
            pl.BlockSpec((cb, h, w), lambda b: (b, 0, 0)),
            pl.BlockSpec((ho, h), lambda b: (0, 0)),
            pl.BlockSpec((w, wo), lambda b: (0, 0)),
        ],
        out_specs=pl.BlockSpec((cb, ho, wo), lambda b: (b, 0, 0)),
        compiler_params=pltpu.CompilerParams(
            dimension_semantics=("parallel",),
            vmem_limit_bytes=vmem_limit,
        ),
    )(xf, wh, wwt)

    return out_flat.reshape(n, c, ho, wo)   # metadata-only reshape, no slice/copy


# ---------------------------------------------------------------------------
# Plain-JAX reference (same separable weight matrices).
# ---------------------------------------------------------------------------
def _reference(x, scale_factor, align_corners, size=None):
    n, c, h, w = x.shape
    if size is not None:
        ho, wo = size
    else:
        ho = int(math.floor(h * scale_factor))
        wo = int(math.floor(w * scale_factor))
    wh = jnp.asarray(_interp_matrix(h, ho, align_corners))
    ww = jnp.asarray(_interp_matrix(w, wo, align_corners))
    return jnp.einsum("oh,nchw,pw->ncop", wh, x.astype(jnp.float32), ww).astype(x.dtype)


if __name__ == "__main__":
    # DPT head uses Interpolate(scale_factor=2, mode="bilinear", align_corners=True).
    x = jax.random.normal(jax.random.PRNGKey(0), (2, 4, 16, 16), dtype=jnp.float32)
    y = jax.block_until_ready(
        interpolate_pallas(x, scale_factor=2.0, mode="bilinear", align_corners=True))
    assert y.shape == (2, 4, 32, 32), y.shape
    y_ref = _reference(x, 2.0, True)
    assert jnp.allclose(y, y_ref, atol=1e-5, rtol=1e-5), "mismatch (align_corners=True)"

    # Multi-step grid with a ragged last channel block (no wrapper pad / output
    # slice any more) and the align_corners=False path.  The small block cap is
    # only used to force a multi-step grid at these tiny test shapes.
    x2 = jax.random.normal(jax.random.PRNGKey(1), (1, 21, 8, 16), dtype=jnp.float32)
    y2 = jax.block_until_ready(
        interpolate_pallas(x2, scale_factor=2.0, mode="bilinear", align_corners=False,
                           max_channels_per_block=8))
    assert y2.shape == (1, 21, 16, 32), y2.shape
    y2_ref = _reference(x2, 2.0, False)
    assert jnp.allclose(y2, y2_ref, atol=1e-5, rtol=1e-5), "mismatch (align_corners=False)"

    # bf16 input keeps exact f32 interpolation weights / accumulation.
    x3 = jax.random.normal(jax.random.PRNGKey(2), (1, 4, 16, 16),
                           dtype=jnp.float32).astype(jnp.bfloat16)
    y3 = jax.block_until_ready(
        interpolate_pallas(x3, scale_factor=2.0, mode="bilinear", align_corners=True))
    assert y3.shape == (1, 4, 32, 32), y3.shape
    y3_ref = _reference(x3, 2.0, True)
    assert jnp.allclose(y3.astype(jnp.float32), y3_ref.astype(jnp.float32),
                        atol=2e-2, rtol=2e-2), "mismatch (bf16 input)"

    print("KERNEL_OK")
</pallas_src>

<mosaic_0001>
module attributes {stable_mosaic.version = 11 : i64} {
  func.func @_interp_kernel(%arg0: i32, %arg1: memref<8x16x16xf32, #tpu.memory_space<vmem>>, %arg2: memref<32x16xf32, #tpu.memory_space<vmem>>, %arg3: memref<16x32xf32, #tpu.memory_space<vmem>>, %arg4: memref<8x32x32xf32, #tpu.memory_space<vmem>>) attributes {dimension_semantics = [#tpu.dimension_semantics<parallel>], iteration_bounds = array<i64: 1>, scalar_prefetch = 0 : i64, scratch_operands = 0 : i64, tpu.core_type = #tpu.core_type<tc>, window_params = [{transform_indices = @transform_0, window_bounds = array<i64: 8, 16, 16>}, {pipeline_mode = #tpu.pipeline_mode<synchronous>, transform_indices = @transform_1, window_bounds = array<i64: 32, 16>}, {pipeline_mode = #tpu.pipeline_mode<synchronous>, transform_indices = @transform_2, window_bounds = array<i64: 16, 32>}, {transform_indices = @transform_3, window_bounds = array<i64: 8, 32, 32>}]} {
    %c0 = arith.constant 0 : index
    %c0_0 = arith.constant 0 : index
    %0 = vector.load %arg2[%c0, %c0_0] : memref<32x16xf32, #tpu.memory_space<vmem>>, vector<32x16xf32>
    %c0_1 = arith.constant 0 : index
    %c0_2 = arith.constant 0 : index
    %1 = vector.load %arg3[%c0_1, %c0_2] : memref<16x32xf32, #tpu.memory_space<vmem>>, vector<16x32xf32>
    %c0_i32 = arith.constant 0 : i32
    %c8_i32 = arith.constant 8 : i32
    %2 = arith.addi %c0_i32, %c8_i32 : i32
    %c1_i32 = arith.constant 1 : i32
    scf.for %arg5 = %c0_i32 to %2 step %c1_i32  : i32 {
      %3 = arith.index_cast %arg5 : i32 to index
      %c0_4 = arith.constant 0 : index
      %c0_5 = arith.constant 0 : index
      %4 = vector.load %arg1[%3, %c0_4, %c0_5] : memref<8x16x16xf32, #tpu.memory_space<vmem>>, vector<1x16x16xf32>
      %5 = vector.shape_cast %4 : vector<1x16x16xf32> to vector<16x16xf32>
      %cst = arith.constant dense<0.000000e+00> : vector<32x16xf32>
      %6 = tpu.matmul %0, %5, %cst {dimension_numbers = #tpu.dot_dimension_numbers<[1], [0], [0], [1], [0, 0, 1, 1], [], []>} : vector<32x16xf32>, vector<16x16xf32>, vector<32x16xf32> -> vector<32x16xf32>
      %cst_6 = arith.constant dense<0.000000e+00> : vector<32x32xf32>
      %7 = tpu.matmul %6, %1, %cst_6 {dimension_numbers = #tpu.dot_dimension_numbers<[1], [0], [0], [1], [0, 0, 1, 1], [], []>} : vector<32x16xf32>, vector<16x32xf32>, vector<32x32xf32> -> vector<32x32xf32>
      %8 = arith.index_cast %arg5 : i32 to index
      %c0_7 = arith.constant 0 : index
      %c0_8 = arith.constant 0 : index
      %9 = vector.load %arg4[%8, %c0_7, %c0_8] : memref<8x32x32xf32, #tpu.memory_space<vmem>>, vector<1x32x32xf32>
      %10 = vector.shape_cast %9 : vector<1x32x32xf32> to vector<32x32xf32>
      %11 = vector.shape_cast %7 : vector<32x32xf32> to vector<1x32x32xf32>
      tpu.vector_store %arg4[%8, %c0_7, %c0_8], %11 {strides = array<i32>} : memref<8x32x32xf32, #tpu.memory_space<vmem>>, vector<1x32x32xf32>,
    }
    %c8_i32_3 = arith.constant 8 : i32
    return
  }
  func.func @transform_0(%arg0: i32) -> (i32, i32, i32) {
    %c0_i32 = arith.constant 0 : i32
    %c0_i32_0 = arith.constant 0 : i32
    %c0_i32_1 = arith.constant 0 : i32
    return %arg0, %c0_i32, %c0_i32_0 : i32, i32, i32
  }
  func.func @transform_1(%arg0: i32) -> (i32, i32) {
    %c0_i32 = arith.constant 0 : i32
    %c0_i32_0 = arith.constant 0 : i32
    %c0_i32_1 = arith.constant 0 : i32
    return %c0_i32, %c0_i32_0 : i32, i32
  }
  func.func @transform_2(%arg0: i32) -> (i32, i32) {
    %c0_i32 = arith.constant 0 : i32
    %c0_i32_0 = arith.constant 0 : i32
    %c0_i32_1 = arith.constant 0 : i32
    return %c0_i32, %c0_i32_0 : i32, i32
  }
  func.func @transform_3(%arg0: i32) -> (i32, i32, i32) {
    %c0_i32 = arith.constant 0 : i32
    %c0_i32_0 = arith.constant 0 : i32
    %c0_i32_1 = arith.constant 0 : i32
    return %arg0, %c0_i32, %c0_i32_0 : i32, i32, i32
  }
}

</mosaic_0001>

<llo_original>
// kernel: tpu_custom_call.1
$region0: #{tpu_custom_call.1}
  #allocation0 [shape = 'u32[]', space=smem, size = 0x4, offset = 0x4, fixed_abs, tag = 'smem constant byte address 0x4 - core index']
  #allocation1 [shape = 'u32[144,128]{1,0:T(1,128)}', space=vmem, size = 0x12000, scoped, tag = 'internal scratch']
  %s0 = inlined_call_operand.hbm [shape: f32[8,16,16], index: 0, kind: input, shape index: {}]
  %s1 = inlined_call_operand.vmem [shape: f32[32,16], index: 1, kind: input, shape index: {}]
  %s2 = inlined_call_operand.vmem [shape: f32[16,32], index: 2, kind: input, shape index: {}]
  %s3 = inlined_call_operand.hbm [shape: f32[8,32,32], index: 3, kind: output, shape index: {}]
  %s4 = sld [smem:[#allocation0]]
  $region33: #{tpu_custom_call.1} parent=0
    _
  %s6 = ssub.s32 1, %s4
  %s7 = scalar_select 0, %s6, %s4
  $region1: #{tpu_custom_call.1} parent=0
    #allocation2 [shape = 'u8[65536]{0}', space=vmem, size = 0x10000, scoped, tag = 'input window, operand 0, single buffered']
    #allocation3 [shape = 's32[1]{0}', space=sflag, size = 0x4, scoped, tag = 'scoped memory for tpu_custom_call.1']
    #allocation4 [shape = 's32[1]{0}', space=sflag, size = 0x4, scoped, tag = 'scoped memory for tpu_custom_call.1']
    #allocation5 [shape = 'u8[131072]{0}', space=vmem, size = 0x20000, scoped, tag = 'output window, operand 0, single buffered']
    %8 = vsyncpa [#allocation3], 0
    %9 = vsyncpa [#allocation4], 0
    // Predicated region
    $region2: #{tpu_custom_call.1} parent=1 // pred_check
      _
    $region3: #{tpu_custom_call.1} parent=1 // pred_check_branch
      %11 = sbr.rel (0) target = $region5
    $region4: #{tpu_custom_call.1} parent=1 // pred_region
      %s13 = ssub.s32 2048, 2048
      %14 = vsyncadd [#allocation3], %s13
      %s15 = sshll.u32 [#allocation2], 4
      %s16 = int_to_ptr.vmem [resolvable:$true] %s15
      %21 = dma.hbm_to_vmem [thread:$0]  %s0, 2048, %s16, [#allocation3], 128, 128, 8
    $region5: #{tpu_custom_call.1} parent=1 // pred_fallthru
      _
    // Predicated region
    $region6: #{tpu_custom_call.1} parent=1 // pred_check
      _
    $region7: #{tpu_custom_call.1} parent=1 // pred_check_branch
      %23 = sbr.rel (0) target = $region9
    $region8: #{tpu_custom_call.1} parent=1 // pred_region
      _
    $region9: #{tpu_custom_call.1} parent=1 // pred_fallthru
      _
    // Predicated region
    $region10: #{tpu_custom_call.1} parent=1 // pred_check
      _
    $region11: #{tpu_custom_call.1} parent=1 // pred_check_branch
      %25 = sbr.rel (0) target = $region13
    $region12: #{tpu_custom_call.1} parent=1 // pred_region
      _
    $region13: #{tpu_custom_call.1} parent=1 // pred_fallthru
      _
    // Predicated region
    $region14: #{tpu_custom_call.1} parent=1 // pred_check
      _
    $region15: #{tpu_custom_call.1} parent=1 // pred_check_branch
      %27 = sbr.rel (0) target = $region17
    $region16: #{tpu_custom_call.1} parent=1 // pred_region
      %28 = dma.done [#allocation3], 2048
    $region17: #{tpu_custom_call.1} parent=1 // pred_fallthru
      _
    %v29 = vld [vmem:[%s1] sm:$0xff]
    %v30 = vld [vmem:[%s1 + $0x8] sm:$0xff]
    %v31 = vld [vmem:[%s1 + $0x10] sm:$0xff]
    %v32 = vld [vmem:[%s1 + $0x18] sm:$0xff]
    %v33 = vld [vmem:[%s2] sm:$0xff]
    %v34 = vld [vmem:[%s2 + $0x8] sm:$0xff]
    loop: start=0, step=1, limit=8
    $region18: #{tpu_custom_call.1} parent=1 // loop_pre_header
      _
    $region19: #{tpu_custom_call.1} parent=1 // loop_header
      %s36 = sphi 0, %s40
      %p37 = scmp.ge.s32.totalorder %s36, 8
    $region20: #{tpu_custom_call.1} parent=1 // loop_header_branch
      %39 = sbr.rel (%p37) target = $region24
    $region21: #{tpu_custom_call.1} parent=1 // loop_body
      %s41 = smul.u32 %s36, 16
      %s42 = scalar_lea.vmem [#allocation2], %s41
      %v43 = vld [vmem:[%s42] sm:$0xff]
      %v44 = vld [vmem:[%s42 + $0x8] sm:$0xff]
      %vm45 = vcmask 130048
      %v47 = vsel %vm45, %v29, 0
      %v50 = vsel %vm45, %v30, 0
      %v53 = vsel %vm45, %v31, 0
      %v56 = vsel %vm45, %v32, 0
      %58 = vmatprep.subr.mxu0 0.0
      %59 = vmatpush1.msra.mxu0 0.0
      %60 = vmatprep.subr.mxu0 0.0
      %61 = vmatpush1.msra.mxu0 0.0
      %62 = vmatprep.subr.mxu0 0.0
      %63 = vmatpush1.msra.mxu0 0.0
      %64 = vmatprep.subr.mxu0 0.0
      %65 = vmatpush1.msra.mxu0 0.0
      %66 = vmatprep.subr.mxu0 0.0
      %67 = vmatpush1.msra.mxu0 0.0
      %68 = vmatprep.subr.mxu0 0.0
      %69 = vmatpush1.msra.mxu0 0.0
      %70 = vmatprep.subr.mxu0 0.0
      %71 = vmatpush1.msra.mxu0 0.0
      %72 = vmatprep.subr.mxu0 0.0
      %73 = vmatpush1.msra.mxu0 0.0
      %74 = vmatprep.subr.mxu0 0.0
      %75 = vmatpush1.msra.mxu0 0.0
      %76 = vmatprep.subr.mxu0 0.0
      %77 = vmatpush1.msra.mxu0 0.0
      %78 = vmatprep.subr.mxu0 0.0
      %79 = vmatpush1.msra.mxu0 0.0
      %80 = vmatprep.subr.mxu0 0.0
      %81 = vmatpush1.msra.mxu0 0.0
      %82 = vmatprep.subr.mxu0 0.0
      %83 = vmatpush1.msra.mxu0 0.0
      %84 = vmatprep.subr.mxu0 0.0
      %85 = vmatpush1.msra.mxu0 0.0
      %86 = vmatprep.subr.mxu0 0.0
      %87 = vmatpush1.msra.mxu0 %v44
      %88 = vmatprep.subr.mxu0 0.0
      %89 = vmatpush1.msra.mxu0 %v43
      %90 = vmatprep.subr.mxu0 0.0
      %91 = vmatpush2.msra.mxu0 0.0
      %92 = vmatprep.subr.mxu0 0.0
      %93 = vmatpush2.msra.mxu0 0.0
      %94 = vmatprep.subr.mxu0 0.0
      %95 = vmatpush2.msra.mxu0 0.0
      %96 = vmatprep.subr.mxu0 0.0
      %97 = vmatpush2.msra.mxu0 0.0
      %98 = vmatprep.subr.mxu0 0.0
      %99 = vmatpush2.msra.mxu0 0.0
      %100 = vmatprep.subr.mxu0 0.0
      %101 = vmatpush2.msra.mxu0 0.0
      %102 = vmatprep.subr.mxu0 0.0
      %103 = vmatpush2.msra.mxu0 0.0
      %104 = vmatprep.subr.mxu0 0.0
      %105 = vmatpush2.msra.mxu0 0.0
      %106 = vmatprep.subr.mxu0 0.0
      %107 = vmatpush2.msra.mxu0 0.0
      %108 = vmatprep.subr.mxu0 0.0
      %109 = vmatpush2.msra.mxu0 0.0
      %110 = vmatprep.subr.mxu0 0.0
      %111 = vmatpush2.msra.mxu0 0.0
      %112 = vmatprep.subr.mxu0 0.0
      %113 = vmatpush2.msra.mxu0 0.0
      %114 = vmatprep.subr.mxu0 0.0
      %115 = vmatpush2.msra.mxu0 0.0
      %116 = vmatprep.subr.mxu0 0.0
      %117 = vmatpush2.msra.mxu0 0.0
      %118 = vmatprep.subr.mxu0 0.0
      %119 = vmatpush2.msra.mxu0 0.0
      %120 = vmatprep.subr.mxu0 0.0
      %121 = vmatpush2.msra.mxu0 0.0
      %122 = vmatprep.mubr.f32.mxu0 0.0
      %123 = vmatmul.mubr.f32.gmra.mxu0 %v47
      %v124 = vpop.f32.mrf.mxu0
      %v125 = vadd.f32 0.0, %v124
      %v126 = vpop.f32.mrf.mxu0
      %127 = vmatprep.mubr.f32.mxu0 0.0
      %128 = vmatmul.mubr.f32.gmra.mxu0 %v50
      %v129 = vpop.f32.mrf.mxu0
      %v130 = vadd.f32 0.0, %v129
      %v131 = vpop.f32.mrf.mxu0
      %132 = vmatprep.mubr.f32.mxu0 0.0
      %133 = vmatmul.mubr.f32.gmra.mxu0 %v53
      %v134 = vpop.f32.mrf.mxu0
      %v135 = vadd.f32 0.0, %v134
      %v136 = vpop.f32.mrf.mxu0
      %137 = vmatprep.mubr.f32.mxu0 0.0
      %138 = vmatmul.mubr.f32.gmra.mxu0 %v56
      %v139 = vpop.f32.mrf.mxu0
      %v140 = vadd.f32 0.0, %v139
      %v141 = vpop.f32.mrf.mxu0
      %142 = vdwg.mxu0
      %v144 = vsel %vm45, %v125, 0
      %v147 = vsel %vm45, %v130, 0
      %v150 = vsel %vm45, %v135, 0
      %v153 = vsel %vm45, %v140, 0
      %155 = vmatprep.subr.mxu0 0.0
      %156 = vmatpush1.msra.mxu0 0.0
      %157 = vmatprep.subr.mxu0 0.0
      %158 = vmatpush1.msra.mxu0 0.0
      %159 = vmatprep.subr.mxu0 0.0
      %160 = vmatpush1.msra.mxu0 0.0
      %161 = vmatprep.subr.mxu0 0.0
      %162 = vmatpush1.msra.mxu0 0.0
      %163 = vmatprep.subr.mxu0 0.0
      %164 = vmatpush1.msra.mxu0 0.0
      %165 = vmatprep.subr.mxu0 0.0
      %166 = vmatpush1.msra.mxu0 0.0
      %167 = vmatprep.subr.mxu0 0.0
      %168 = vmatpush1.msra.mxu0 0.0
      %169 = vmatprep.subr.mxu0 0.0
      %170 = vmatpush1.msra.mxu0 0.0
      %171 = vmatprep.subr.mxu0 0.0
      %172 = vmatpush1.msra.mxu0 0.0
      %173 = vmatprep.subr.mxu0 0.0
      %174 = vmatpush1.msra.mxu0 0.0
      %175 = vmatprep.subr.mxu0 0.0
      %176 = vmatpush1.msra.mxu0 0.0
      %177 = vmatprep.subr.mxu0 0.0
      %178 = vmatpush1.msra.mxu0 0.0
      %179 = vmatprep.subr.mxu0 0.0
      %180 = vmatpush1.msra.mxu0 0.0
      %181 = vmatprep.subr.mxu0 0.0
      %182 = vmatpush1.msra.mxu0 0.0
      %183 = vmatprep.subr.mxu0 0.0
      %184 = vmatpush1.msra.mxu0 %v34
      %185 = vmatprep.subr.mxu0 0.0
      %186 = vmatpush1.msra.mxu0 %v33
      %187 = vmatprep.subr.mxu0 0.0
      %188 = vmatpush2.msra.mxu0 0.0
      %189 = vmatprep.subr.mxu0 0.0
      %190 = vmatpush2.msra.mxu0 0.0
      %191 = vmatprep.subr.mxu0 0.0
      %192 = vmatpush2.msra.mxu0 0.0
      %193 = vmatprep.subr.mxu0 0.0
      %194 = vmatpush2.msra.mxu0 0.0
      %195 = vmatprep.subr.mxu0 0.0
      %196 = vmatpush2.msra.mxu0 0.0
      %197 = vmatprep.subr.mxu0 0.0
      %198 = vmatpush2.msra.mxu0 0.0
      %199 = vmatprep.subr.mxu0 0.0
      %200 = vmatpush2.msra.mxu0 0.0
      %201 = vmatprep.subr.mxu0 0.0
      %202 = vmatpush2.msra.mxu0 0.0
      %203 = vmatprep.subr.mxu0 0.0
      %204 = vmatpush2.msra.mxu0 0.0
      %205 = vmatprep.subr.mxu0 0.0
      %206 = vmatpush2.msra.mxu0 0.0
      %207 = vmatprep.subr.mxu0 0.0
      %208 = vmatpush2.msra.mxu0 0.0
      %209 = vmatprep.subr.mxu0 0.0
      %210 = vmatpush2.msra.mxu0 0.0
      %211 = vmatprep.subr.mxu0 0.0
      %212 = vmatpush2.msra.mxu0 0.0
      %213 = vmatprep.subr.mxu0 0.0
      %214 = vmatpush2.msra.mxu0 0.0
      %215 = vmatprep.subr.mxu0 0.0
      %216 = vmatpush2.msra.mxu0 0.0
      %217 = vmatprep.subr.mxu0 0.0
      %218 = vmatpush2.msra.mxu0 0.0
      %219 = vmatprep.mubr.f32.mxu0 0.0
      %220 = vmatmul.mubr.f32.gmra.mxu0 %v144
      %v221 = vpop.f32.mrf.mxu0
      %v222 = vadd.f32 0.0, %v221
      %v223 = vpop.f32.mrf.mxu0
      %224 = vmatprep.mubr.f32.mxu0 0.0
      %225 = vmatmul.mubr.f32.gmra.mxu0 %v147
      %v226 = vpop.f32.mrf.mxu0
      %v227 = vadd.f32 0.0, %v226
      %v228 = vpop.f32.mrf.mxu0
      %229 = vmatprep.mubr.f32.mxu0 0.0
      %230 = vmatmul.mubr.f32.gmra.mxu0 %v150
      %v231 = vpop.f32.mrf.mxu0
      %v232 = vadd.f32 0.0, %v231
      %v233 = vpop.f32.mrf.mxu0
      %234 = vmatprep.mubr.f32.mxu0 0.0
      %235 = vmatmul.mubr.f32.gmra.mxu0 %v153
      %v236 = vpop.f32.mrf.mxu0
      %v237 = vadd.f32 0.0, %v236
      %v238 = vpop.f32.mrf.mxu0
      %239 = vdwg.mxu0
      %s240 = smul.u32 %s36, 32
      %s241 = scalar_lea.vmem [#allocation5], %s240
      %vm242 = vcmask 261120
      %243 = vst.msk [vmem:[%s241] sm:$0xff] %vm242, %v222
      %244 = vst.msk [vmem:[%s241 + $0x8] sm:$0xff] %vm242, %v227
      %245 = vst.msk [vmem:[%s241 + $0x10] sm:$0xff] %vm242, %v232
      %246 = vst.msk [vmem:[%s241 + $0x18] sm:$0xff] %vm242, %v237
    $region22: #{tpu_custom_call.1} parent=1 // loop_footer
      %s40 = sadd.s32 1, %s36
    $region23: #{tpu_custom_call.1} parent=1 // loop_footer_branch
      %35 = sbr.rel target = $region19
    $region24: #{tpu_custom_call.1} parent=1 // loop_exit
      _
    // Predicated region
    $region25: #{tpu_custom_call.1} parent=1 // pred_check
      _
    $region26: #{tpu_custom_call.1} parent=1 // pred_check_branch
      %248 = sbr.rel (0) target = $region28
    $region27: #{tpu_custom_call.1} parent=1 // pred_region
      %s250 = ssub.s32 4096, 4096
      %251 = vsyncadd [#allocation4], %s250
      %s252 = sshll.u32 [#allocation5], 4
      %s253 = int_to_ptr.vmem [resolvable:$true] %s252
      %258 = dma.vmem_to_hbm [thread:$0]  %s253, 4096, %s3, [#allocation4], 128, 128, 8
    $region28: #{tpu_custom_call.1} parent=1 // pred_fallthru
      _
    // Predicated region
    $region29: #{tpu_custom_call.1} parent=1 // pred_check
      _
    $region30: #{tpu_custom_call.1} parent=1 // pred_check_branch
      %260 = sbr.rel (0) target = $region32
    $region31: #{tpu_custom_call.1} parent=1 // pred_region
      %261 = dma.done [#allocation4], 4096
    $region32: #{tpu_custom_call.1} parent=1 // pred_fallthru
      _
    %262 = vsyncpa [#allocation3], 1
    %263 = vsyncpa [#allocation4], 1

</llo_original>
